<compile_context>
chip_gen: v7x
topology: tpu7x:2x2x1
jax: 0.10.0
libtpu: 0.0.40
codegen_flags: <defaults>
</compile_context>

<pallas_src>
import functools

import jax
import jax.numpy as jnp
from jax.experimental import pallas as pl
from jax.experimental.pallas import tpu as pltpu


def _discriminator_kernel(params_ref, z_ref, out_ref, *, z_dim, hidden):
    """params_ref: SMEM (z_dim*hidden + 2*hidden + 1,) packed [w1 | b1 | w2 | b2].
    z_ref:   VMEM (z_dim, TILE_B)   (batch on lanes)
    out_ref: VMEM (1, TILE_B)
    """
    z = z_ref[...]
    if z.dtype != jnp.float32:
        # v5e has no bf16 VPU/EUP: always compute in f32.
        z = z.astype(jnp.float32)

    w1_off = 0
    b1_off = z_dim * hidden
    w2_off = b1_off + hidden
    b2_off = w2_off + hidden

    acc = None
    # Fully unrolled tiny MLP: ~z_dim*hidden + 2*hidden VPU FMAs per batch tile.
    for j in range(hidden):
        h = params_ref[w1_off + j] * z[0:1, :]
        for i in range(1, z_dim):
            h = h + params_ref[w1_off + i * hidden + j] * z[i:i + 1, :]
        h = h + params_ref[b1_off + j]
        h = jnp.maximum(h, 0.0)                  # ReLU (VPU)
        term = params_ref[w2_off + j] * h
        acc = term if acc is None else acc + term
    acc = acc + params_ref[b2_off]

    out_ref[...] = jax.nn.sigmoid(acc).astype(out_ref.dtype)   # EUP exp + VPU recip


def discriminator_mnist_forward(z, w1, b1, w2, b2, *, tile_b=4096):
    """z: (B, z_dim) -> (B, 1), matching PyTorch Discriminator_MNIST.forward.

    Weights stored transposed vs. PyTorch: w1 (z_dim, H), w2 (H, 1).
    """
    B, z_dim = z.shape
    hidden = w1.shape[1]

    lane = 128
    # Lane-dense batch tile: multiple of 128, capped at tile_b, covering B.
    tile_b = max(lane, (int(tile_b) // lane) * lane)
    tb = max(lane, min(tile_b, pl.cdiv(B, lane) * lane))
    b_pad = pl.cdiv(B, tb) * tb

    # Batch-on-lanes layout; pad batch to a tile multiple (padded lanes sliced off).
    zt = jnp.transpose(z)                                   # (z_dim, B)
    if b_pad != B:
        zt = jnp.pad(zt, ((0, 0), (0, b_pad - B)))

    # Pack all parameters into one SMEM array -> single tiny DMA.
    params = jnp.concatenate(
        [w1.reshape(-1), b1.reshape(-1), w2.reshape(-1), b2.reshape(-1)]
    ).astype(jnp.float32)

    kernel = functools.partial(_discriminator_kernel, z_dim=z_dim, hidden=hidden)

    out_t = pl.pallas_call(
        kernel,
        out_shape=jax.ShapeDtypeStruct((1, b_pad), jnp.float32),
        grid=(b_pad // tb,),
        in_specs=[
            pl.BlockSpec(memory_space=pltpu.MemorySpace.SMEM),   # packed params
            pl.BlockSpec((z_dim, tb), lambda i: (0, i)),         # z tile, batch on lanes
        ],
        out_specs=pl.BlockSpec((1, tb), lambda i: (0, i)),       # lane-dense output
        compiler_params=pltpu.CompilerParams(
            dimension_semantics=("parallel",)),                   # shard over 2 TCs on v7x
    )(params, zt)

    return jnp.transpose(out_t)[:B, :]                            # (B, 1)


def init_params(key, z_dim=2, hidden=5):
    """kaiming_normal_ (fan_in, a=0) weights, zero biases — matches PyTorch init.

    Weights stored transposed: (in_features, out_features).
    """
    k1, k2 = jax.random.split(key)
    std1 = (2.0 / z_dim) ** 0.5
    std2 = (2.0 / hidden) ** 0.5
    w1 = std1 * jax.random.normal(k1, (z_dim, hidden), dtype=jnp.float32)
    b1 = jnp.zeros((hidden,), dtype=jnp.float32)
    w2 = std2 * jax.random.normal(k2, (hidden, 1), dtype=jnp.float32)
    b2 = jnp.zeros((1,), dtype=jnp.float32)
    return w1, b1, w2, b2


if __name__ == "__main__":
    key = jax.random.PRNGKey(0)
    k_z, k_p = jax.random.split(key)

    z_dim = 2
    batch = 8
    z = jax.random.normal(k_z, (batch, z_dim), dtype=jnp.float32)

    w1, b1, w2, b2 = init_params(k_p, z_dim=z_dim, hidden=5)

    out = discriminator_mnist_forward(z, w1, b1, w2, b2)
    out = jax.block_until_ready(out)

    # Reference check (plain JAX) for semantic equivalence with the PyTorch module.
    h_ref = jnp.maximum(z @ w1 + b1[None, :], 0.0)
    y_ref = jax.nn.sigmoid(h_ref @ w2 + b2[None, :])
    assert out.shape == (batch, 1)
    assert jnp.allclose(out, y_ref, atol=1e-5), "mismatch vs reference"

    print("KERNEL_OK")
</pallas_src>

<mosaic_0001>
module attributes {stable_mosaic.version = 11 : i64} {
  func.func @_discriminator_kernel(%arg0: i32, %arg1: memref<21xf32, #tpu.memory_space<smem>>, %arg2: memref<2x128xf32, #tpu.memory_space<vmem>>, %arg3: memref<1x128xf32, #tpu.memory_space<vmem>>) attributes {dimension_semantics = [#tpu.dimension_semantics<parallel>], iteration_bounds = array<i64: 1>, scalar_prefetch = 0 : i64, scratch_operands = 0 : i64, tpu.core_type = #tpu.core_type<tc>, window_params = [{transform_indices = @transform_0, window_bounds = array<i64: 21>}, {transform_indices = @transform_1, window_bounds = array<i64: 2, 128>}, {transform_indices = @transform_2, window_bounds = array<i64: 1, 128>}]} {
    %c0 = arith.constant 0 : index
    %c0_0 = arith.constant 0 : index
    %0 = vector.load %arg2[%c0, %c0_0] : memref<2x128xf32, #tpu.memory_space<vmem>>, vector<2x128xf32>
    %c0_1 = arith.constant 0 : index
    %1 = memref.load %arg1[%c0_1] : memref<21xf32, #tpu.memory_space<smem>>
    %2 = vector.extract_strided_slice %0 {offsets = [0, 0], sizes = [1, 128], strides = [1, 1]} : vector<2x128xf32> to vector<1x128xf32>
    %3 = vector.broadcast %1 : f32 to vector<1x128xf32>
    %4 = arith.mulf %3, %2 : vector<1x128xf32>
    %c5 = arith.constant 5 : index
    %5 = memref.load %arg1[%c5] : memref<21xf32, #tpu.memory_space<smem>>
    %6 = vector.extract_strided_slice %0 {offsets = [1, 0], sizes = [1, 128], strides = [1, 1]} : vector<2x128xf32> to vector<1x128xf32>
    %7 = vector.broadcast %5 : f32 to vector<1x128xf32>
    %8 = arith.mulf %7, %6 : vector<1x128xf32>
    %9 = arith.addf %4, %8 : vector<1x128xf32>
    %c10 = arith.constant 10 : index
    %10 = memref.load %arg1[%c10] : memref<21xf32, #tpu.memory_space<smem>>
    %11 = vector.broadcast %10 : f32 to vector<1x128xf32>
    %12 = arith.addf %9, %11 : vector<1x128xf32>
    %cst = arith.constant 0.000000e+00 : f32
    %13 = vector.broadcast %cst : f32 to vector<1x128xf32>
    %14 = arith.maximumf %12, %13 : vector<1x128xf32>
    %c15 = arith.constant 15 : index
    %15 = memref.load %arg1[%c15] : memref<21xf32, #tpu.memory_space<smem>>
    %16 = vector.broadcast %15 : f32 to vector<1x128xf32>
    %17 = arith.mulf %16, %14 : vector<1x128xf32>
    %c1 = arith.constant 1 : index
    %18 = memref.load %arg1[%c1] : memref<21xf32, #tpu.memory_space<smem>>
    %19 = vector.extract_strided_slice %0 {offsets = [0, 0], sizes = [1, 128], strides = [1, 1]} : vector<2x128xf32> to vector<1x128xf32>
    %20 = vector.broadcast %18 : f32 to vector<1x128xf32>
    %21 = arith.mulf %20, %19 : vector<1x128xf32>
    %c6 = arith.constant 6 : index
    %22 = memref.load %arg1[%c6] : memref<21xf32, #tpu.memory_space<smem>>
    %23 = vector.extract_strided_slice %0 {offsets = [1, 0], sizes = [1, 128], strides = [1, 1]} : vector<2x128xf32> to vector<1x128xf32>
    %24 = vector.broadcast %22 : f32 to vector<1x128xf32>
    %25 = arith.mulf %24, %23 : vector<1x128xf32>
    %26 = arith.addf %21, %25 : vector<1x128xf32>
    %c11 = arith.constant 11 : index
    %27 = memref.load %arg1[%c11] : memref<21xf32, #tpu.memory_space<smem>>
    %28 = vector.broadcast %27 : f32 to vector<1x128xf32>
    %29 = arith.addf %26, %28 : vector<1x128xf32>
    %cst_2 = arith.constant 0.000000e+00 : f32
    %30 = vector.broadcast %cst_2 : f32 to vector<1x128xf32>
    %31 = arith.maximumf %29, %30 : vector<1x128xf32>
    %c16 = arith.constant 16 : index
    %32 = memref.load %arg1[%c16] : memref<21xf32, #tpu.memory_space<smem>>
    %33 = vector.broadcast %32 : f32 to vector<1x128xf32>
    %34 = arith.mulf %33, %31 : vector<1x128xf32>
    %35 = arith.addf %17, %34 : vector<1x128xf32>
    %c2 = arith.constant 2 : index
    %36 = memref.load %arg1[%c2] : memref<21xf32, #tpu.memory_space<smem>>
    %37 = vector.extract_strided_slice %0 {offsets = [0, 0], sizes = [1, 128], strides = [1, 1]} : vector<2x128xf32> to vector<1x128xf32>
    %38 = vector.broadcast %36 : f32 to vector<1x128xf32>
    %39 = arith.mulf %38, %37 : vector<1x128xf32>
    %c7 = arith.constant 7 : index
    %40 = memref.load %arg1[%c7] : memref<21xf32, #tpu.memory_space<smem>>
    %41 = vector.extract_strided_slice %0 {offsets = [1, 0], sizes = [1, 128], strides = [1, 1]} : vector<2x128xf32> to vector<1x128xf32>
    %42 = vector.broadcast %40 : f32 to vector<1x128xf32>
    %43 = arith.mulf %42, %41 : vector<1x128xf32>
    %44 = arith.addf %39, %43 : vector<1x128xf32>
    %c12 = arith.constant 12 : index
    %45 = memref.load %arg1[%c12] : memref<21xf32, #tpu.memory_space<smem>>
    %46 = vector.broadcast %45 : f32 to vector<1x128xf32>
    %47 = arith.addf %44, %46 : vector<1x128xf32>
    %cst_3 = arith.constant 0.000000e+00 : f32
    %48 = vector.broadcast %cst_3 : f32 to vector<1x128xf32>
    %49 = arith.maximumf %47, %48 : vector<1x128xf32>
    %c17 = arith.constant 17 : index
    %50 = memref.load %arg1[%c17] : memref<21xf32, #tpu.memory_space<smem>>
    %51 = vector.broadcast %50 : f32 to vector<1x128xf32>
    %52 = arith.mulf %51, %49 : vector<1x128xf32>
    %53 = arith.addf %35, %52 : vector<1x128xf32>
    %c3 = arith.constant 3 : index
    %54 = memref.load %arg1[%c3] : memref<21xf32, #tpu.memory_space<smem>>
    %55 = vector.extract_strided_slice %0 {offsets = [0, 0], sizes = [1, 128], strides = [1, 1]} : vector<2x128xf32> to vector<1x128xf32>
    %56 = vector.broadcast %54 : f32 to vector<1x128xf32>
    %57 = arith.mulf %56, %55 : vector<1x128xf32>
    %c8 = arith.constant 8 : index
    %58 = memref.load %arg1[%c8] : memref<21xf32, #tpu.memory_space<smem>>
    %59 = vector.extract_strided_slice %0 {offsets = [1, 0], sizes = [1, 128], strides = [1, 1]} : vector<2x128xf32> to vector<1x128xf32>
    %60 = vector.broadcast %58 : f32 to vector<1x128xf32>
    %61 = arith.mulf %60, %59 : vector<1x128xf32>
    %62 = arith.addf %57, %61 : vector<1x128xf32>
    %c13 = arith.constant 13 : index
    %63 = memref.load %arg1[%c13] : memref<21xf32, #tpu.memory_space<smem>>
    %64 = vector.broadcast %63 : f32 to vector<1x128xf32>
    %65 = arith.addf %62, %64 : vector<1x128xf32>
    %cst_4 = arith.constant 0.000000e+00 : f32
    %66 = vector.broadcast %cst_4 : f32 to vector<1x128xf32>
    %67 = arith.maximumf %65, %66 : vector<1x128xf32>
    %c18 = arith.constant 18 : index
    %68 = memref.load %arg1[%c18] : memref<21xf32, #tpu.memory_space<smem>>
    %69 = vector.broadcast %68 : f32 to vector<1x128xf32>
    %70 = arith.mulf %69, %67 : vector<1x128xf32>
    %71 = arith.addf %53, %70 : vector<1x128xf32>
    %c4 = arith.constant 4 : index
    %72 = memref.load %arg1[%c4] : memref<21xf32, #tpu.memory_space<smem>>
    %73 = vector.extract_strided_slice %0 {offsets = [0, 0], sizes = [1, 128], strides = [1, 1]} : vector<2x128xf32> to vector<1x128xf32>
    %74 = vector.broadcast %72 : f32 to vector<1x128xf32>
    %75 = arith.mulf %74, %73 : vector<1x128xf32>
    %c9 = arith.constant 9 : index
    %76 = memref.load %arg1[%c9] : memref<21xf32, #tpu.memory_space<smem>>
    %77 = vector.extract_strided_slice %0 {offsets = [1, 0], sizes = [1, 128], strides = [1, 1]} : vector<2x128xf32> to vector<1x128xf32>
    %78 = vector.broadcast %76 : f32 to vector<1x128xf32>
    %79 = arith.mulf %78, %77 : vector<1x128xf32>
    %80 = arith.addf %75, %79 : vector<1x128xf32>
    %c14 = arith.constant 14 : index
    %81 = memref.load %arg1[%c14] : memref<21xf32, #tpu.memory_space<smem>>
    %82 = vector.broadcast %81 : f32 to vector<1x128xf32>
    %83 = arith.addf %80, %82 : vector<1x128xf32>
    %cst_5 = arith.constant 0.000000e+00 : f32
    %84 = vector.broadcast %cst_5 : f32 to vector<1x128xf32>
    %85 = arith.maximumf %83, %84 : vector<1x128xf32>
    %c19 = arith.constant 19 : index
    %86 = memref.load %arg1[%c19] : memref<21xf32, #tpu.memory_space<smem>>
    %87 = vector.broadcast %86 : f32 to vector<1x128xf32>
    %88 = arith.mulf %87, %85 : vector<1x128xf32>
    %89 = arith.addf %71, %88 : vector<1x128xf32>
    %c20 = arith.constant 20 : index
    %90 = memref.load %arg1[%c20] : memref<21xf32, #tpu.memory_space<smem>>
    %91 = vector.broadcast %90 : f32 to vector<1x128xf32>
    %92 = arith.addf %89, %91 : vector<1x128xf32>
    %93 = arith.negf %92 : vector<1x128xf32>
    %94 = math.exp %93 : vector<1x128xf32>
    %cst_6 = arith.constant 1.000000e+00 : f32
    %95 = vector.broadcast %cst_6 : f32 to vector<1x128xf32>
    %96 = arith.addf %95, %94 : vector<1x128xf32>
    %97 = arith.divf %95, %96 : vector<1x128xf32>
    %c0_7 = arith.constant 0 : index
    %c0_8 = arith.constant 0 : index
    %98 = vector.load %arg3[%c0_7, %c0_8] : memref<1x128xf32, #tpu.memory_space<vmem>>, vector<1x128xf32>
    tpu.vector_store %arg3[%c0_7, %c0_8], %97 {strides = array<i32>} : memref<1x128xf32, #tpu.memory_space<vmem>>, vector<1x128xf32>,
    return
  }
  func.func @transform_0(%arg0: i32) -> i32 {
    %c0_i32 = arith.constant 0 : i32
    %c0_i32_0 = arith.constant 0 : i32
    return %c0_i32 : i32
  }
  func.func @transform_1(%arg0: i32) -> (i32, i32) {
    %c0_i32 = arith.constant 0 : i32
    %c0_i32_0 = arith.constant 0 : i32
    return %c0_i32, %arg0 : i32, i32
  }
  func.func @transform_2(%arg0: i32) -> (i32, i32) {
    %c0_i32 = arith.constant 0 : i32
    %c0_i32_0 = arith.constant 0 : i32
    return %c0_i32, %arg0 : i32, i32
  }
}

</mosaic_0001>

<llo_original>
// kernel: tpu_custom_call.1
$region0: #{tpu_custom_call.1}
  #allocation0 [shape = 'u32[]', space=smem, size = 0x4, offset = 0x4, fixed_abs, tag = 'smem constant byte address 0x4 - core index']
  #allocation1 [shape = 'u32[144,128]{1,0:T(1,128)}', space=vmem, size = 0x12000, scoped, tag = 'internal scratch']
  %s0 = inlined_call_operand.hbm [shape: f32[21], index: 0, kind: input, shape index: {}]
  %s1 = inlined_call_operand.vmem [shape: f32[2,128], index: 1, kind: input, shape index: {}]
  %s2 = inlined_call_operand.hbm [shape: f32[1,128], index: 2, kind: output, shape index: {}]
  %s3 = sld [smem:[#allocation0]]
  $region22: #{tpu_custom_call.1} parent=0
    _
  %s5 = ssub.s32 1, %s3
  %s6 = scalar_select 0, %s5, %s3
  $region1: #{tpu_custom_call.1} parent=0
    #allocation2 [shape = 'u8[512]{0}', space=smem, size = 0x200, scoped, tag = 'input window, operand 0, single buffered']
    #allocation3 [shape = 's32[1]{0}', space=sflag, size = 0x4, scoped, tag = 'scoped memory for tpu_custom_call.1']
    #allocation4 [shape = 's32[1]{0}', space=sflag, size = 0x4, scoped, tag = 'scoped memory for tpu_custom_call.1']
    #allocation5 [shape = 'u8[512]{0}', space=vmem, size = 0x400, scoped, tag = 'output window, operand 0, single buffered']
    %7 = vsyncpa [#allocation4], 0
    %8 = vsyncpa [#allocation3], 0
    // Predicated region
    $region2: #{tpu_custom_call.1} parent=1 // pred_check
      _
    $region3: #{tpu_custom_call.1} parent=1 // pred_check_branch
      %10 = sbr.rel (0) target = $region5
    $region4: #{tpu_custom_call.1} parent=1 // pred_region
      %s12 = ssub.s32 16, 16
      %13 = vsyncadd [#allocation4], %s12
      %16 = dma.hbm_to_smem %s0, 16, [#allocation2], [#allocation4]
    $region5: #{tpu_custom_call.1} parent=1 // pred_fallthru
      _
    // Predicated region
    $region6: #{tpu_custom_call.1} parent=1 // pred_check
      _
    $region7: #{tpu_custom_call.1} parent=1 // pred_check_branch
      %18 = sbr.rel (0) target = $region9
    $region8: #{tpu_custom_call.1} parent=1 // pred_region
      _
    $region9: #{tpu_custom_call.1} parent=1 // pred_fallthru
      _
    // Predicated region
    $region10: #{tpu_custom_call.1} parent=1 // pred_check
      _
    $region11: #{tpu_custom_call.1} parent=1 // pred_check_branch
      %20 = sbr.rel (0) target = $region13
    $region12: #{tpu_custom_call.1} parent=1 // pred_region
      %21 = dma.done [#allocation4], 16
    $region13: #{tpu_custom_call.1} parent=1 // pred_fallthru
      _
    %22 = sfence
    %v23 = vld [vmem:[%s1] sm:$0x3]
    %s24 = sld [smem:[#allocation2]]
    %v25 = vstv %s24
    %v26 = vmul.f32 %v25, %v23
    %s27 = sld [smem:[#allocation2 + $0x5]]
    %v28 = vstv %s27
    %v29 = vmul.f32 %v28, %v23
    %v31 = vrot.slane %v29, 1
    %v33 = vadd.f32 %v26, %v31
    %s34 = sld [smem:[#allocation2 + $0xa]]
    %v35 = vstv %s34
    %v36 = vadd.f32 %v33, %v35
    %v37 = vmax.f32 %v36, 0.0
    %s38 = sld [smem:[#allocation2 + $0xf]]
    %v39 = vstv %s38
    %v40 = vmul.f32 %v39, %v37
    %s41 = sld [smem:[#allocation2 + $0x1]]
    %v42 = vstv %s41
    %v43 = vmul.f32 %v42, %v23
    %s44 = sld [smem:[#allocation2 + $0x6]]
    %v45 = vstv %s44
    %v46 = vmul.f32 %v45, %v23
    %v48 = vrot.slane %v46, 1
    %v50 = vadd.f32 %v43, %v48
    %s51 = sld [smem:[#allocation2 + $0xb]]
    %v52 = vstv %s51
    %v53 = vadd.f32 %v50, %v52
    %v54 = vmax.f32 %v53, 0.0
    %s55 = sld [smem:[#allocation2 + $0x10]]
    %v56 = vstv %s55
    %v57 = vmul.f32 %v56, %v54
    %v58 = vadd.f32 %v40, %v57
    %s59 = sld [smem:[#allocation2 + $0x2]]
    %v60 = vstv %s59
    %v61 = vmul.f32 %v60, %v23
    %s62 = sld [smem:[#allocation2 + $0x7]]
    %v63 = vstv %s62
    %v64 = vmul.f32 %v63, %v23
    %v66 = vrot.slane %v64, 1
    %v68 = vadd.f32 %v61, %v66
    %s69 = sld [smem:[#allocation2 + $0xc]]
    %v70 = vstv %s69
    %v71 = vadd.f32 %v68, %v70
    %v72 = vmax.f32 %v71, 0.0
    %s73 = sld [smem:[#allocation2 + $0x11]]
    %v74 = vstv %s73
    %v75 = vmul.f32 %v74, %v72
    %v76 = vadd.f32 %v58, %v75
    %s77 = sld [smem:[#allocation2 + $0x3]]
    %v78 = vstv %s77
    %v79 = vmul.f32 %v78, %v23
    %s80 = sld [smem:[#allocation2 + $0x8]]
    %v81 = vstv %s80
    %v82 = vmul.f32 %v81, %v23
    %v84 = vrot.slane %v82, 1
    %v86 = vadd.f32 %v79, %v84
    %s87 = sld [smem:[#allocation2 + $0xd]]
    %v88 = vstv %s87
    %v89 = vadd.f32 %v86, %v88
    %v90 = vmax.f32 %v89, 0.0
    %s91 = sld [smem:[#allocation2 + $0x12]]
    %v92 = vstv %s91
    %v93 = vmul.f32 %v92, %v90
    %v94 = vadd.f32 %v76, %v93
    %s95 = sld [smem:[#allocation2 + $0x4]]
    %v96 = vstv %s95
    %v97 = vmul.f32 %v96, %v23
    %s98 = sld [smem:[#allocation2 + $0x9]]
    %v99 = vstv %s98
    %v100 = vmul.f32 %v99, %v23
    %v102 = vrot.slane %v100, 1
    %v104 = vadd.f32 %v97, %v102
    %s105 = sld [smem:[#allocation2 + $0xe]]
    %v106 = vstv %s105
    %v107 = vadd.f32 %v104, %v106
    %v108 = vmax.f32 %v107, 0.0
    %s109 = sld [smem:[#allocation2 + $0x13]]
    %v110 = vstv %s109
    %v111 = vmul.f32 %v110, %v108
    %v112 = vadd.f32 %v94, %v111
    %s113 = sld [smem:[#allocation2 + $0x14]]
    %v114 = vstv %s113
    %v115 = vadd.f32 %v112, %v114
    %v116 = vxor.u32 %v115, 2147483648
    %v117 = vmul.f32 %v116, 1.442695
    %v118 = vpow.pop %v117
    %v119 = vadd.f32 %v118, 1.0
    %v120 = vrcp.pop %v119
    %v121 = vmul.f32 1.0, %v120
    %122 = vst [vmem:[#allocation5] sm:$0x1] %v121
    // Predicated region
    $region14: #{tpu_custom_call.1} parent=1 // pred_check
      _
    $region15: #{tpu_custom_call.1} parent=1 // pred_check_branch
      %124 = sbr.rel (0) target = $region17
    $region16: #{tpu_custom_call.1} parent=1 // pred_region
      %s126 = ssub.s32 16, 16
      %127 = vsyncadd [#allocation3], %s126
      %s129 = sshll.u32 [#allocation5], 4
      %s130 = int_to_ptr.vmem [resolvable:$true] %s129
      %132 = dma.vmem_to_hbm [thread:$0]  %s130, 16, %s2, [#allocation3]
    $region17: #{tpu_custom_call.1} parent=1 // pred_fallthru
      _
    // Predicated region
    $region18: #{tpu_custom_call.1} parent=1 // pred_check
      _
    $region19: #{tpu_custom_call.1} parent=1 // pred_check_branch
      %134 = sbr.rel (0) target = $region21
    $region20: #{tpu_custom_call.1} parent=1 // pred_region
      %135 = dma.done [#allocation3], 16
    $region21: #{tpu_custom_call.1} parent=1 // pred_fallthru
      _
    %136 = vsyncpa [#allocation3], 1
    %137 = vsyncpa [#allocation4], 1

</llo_original>
